<compile_context>
chip_gen: v6e
topology: v6e:2x2x1
jax: 0.10.0
libtpu: 0.0.40
codegen_flags: <defaults>
</compile_context>

<pallas_src>
import jax
import jax.numpy as jnp
from jax.experimental import pallas as pl
from jax.experimental.pallas import tpu as pltpu

LANE = 128
_MAX_LANE_WIDTH = 1024
_TARGET_BLOCK_BYTES = 2 * 1024 * 1024          # ~2 MiB blocks (measured knee)
_SUBLANE_PACK = {4: 8, 2: 16, 1: 32}           # itemsize -> sublane packing


def nmda_kernel(params_ref, x_ref, o_ref):
    # params_ref: SMEM (2,) f32 = [log(alpha) if alpha > 0 else 0, beta]
    alpha_log = params_ref[0]
    beta = params_ref[1]

    x = x_ref[...].astype(jnp.float32)
    z = beta * x - alpha_log
    # sigmoid(z) = 0.5 * (tanh(z/2) + 1): the transcendental goes to the EUP
    # slot and there is no f32 divide on the VPU. Accurate to f32 ULPs.
    sig = 0.5 * (jnp.tanh(0.5 * z) + 1.0)
    o_ref[...] = (x * sig).astype(o_ref.dtype)


def _pick_lane_width(n_aligned):
    """Widest power-of-two multiple of 128 (<= 1024) dividing n_aligned."""
    cand = _MAX_LANE_WIDTH
    while cand > LANE:
        if n_aligned % cand == 0:
            return cand
        cand //= 2
    return LANE


def _pick_tile_rows(rows, lane_width, itemsize):
    """Block rows sized by element count (~2 MiB), sublane-aligned, >=2 steps."""
    sublane = _SUBLANE_PACK.get(itemsize, 8)
    if rows <= 2 * sublane:
        return rows                               # tiny: one full-extent block
    # ~2 MiB per block regardless of lane_width (feedback: size by elements).
    target = max(sublane, (_TARGET_BLOCK_BYTES // itemsize) // lane_width)
    tile = min(rows, target)
    # Keep at least 2 grid steps so v7x can shard "parallel" over both TCs.
    half = -(-rows // 2)
    tile = min(tile, half)
    tile = max(sublane, (tile // sublane) * sublane)
    # Prefer a tile that divides rows evenly (no ragged masked final block).
    cand = tile
    floor = max(sublane, tile // 2)
    while cand >= floor:
        if rows % cand == 0:
            return cand
        cand -= sublane
    return tile


def _nmda_2d(x2d, params, tile_rows, lane_width, itemsize):
    rows = x2d.shape[0]
    total = rows * lane_width
    grid = (pl.cdiv(rows, tile_rows),)
    return pl.pallas_call(
        nmda_kernel,
        out_shape=jax.ShapeDtypeStruct((rows, lane_width), x2d.dtype),
        grid_spec=pltpu.PrefetchScalarGridSpec(
            num_scalar_prefetch=1,
            grid=grid,
            in_specs=[pl.BlockSpec((tile_rows, lane_width), lambda i, p: (i, 0))],
            out_specs=pl.BlockSpec((tile_rows, lane_width), lambda i, p: (i, 0)),
        ),
        compiler_params=pltpu.CompilerParams(
            dimension_semantics=("parallel",),
        ),
        cost_estimate=pl.CostEstimate(
            flops=6 * total,
            transcendentals=total,
            bytes_accessed=2 * total * itemsize,
        ),
    )(params, x2d)


def nmda_forward(x, alpha, beta):
    """Applies NMDA activation elementwise. x: any shape; alpha/beta: shape (1,)."""
    orig_shape = x.shape
    dtype = x.dtype
    total = x.size
    itemsize = dtype.itemsize

    # Hoist the scalar log(alpha) branch out of the kernel (done once).
    a = alpha.reshape(-1)[0].astype(jnp.float32)
    b = beta.reshape(-1)[0].astype(jnp.float32)
    alpha_log = jnp.where(a > 0,
                          jnp.log(jnp.where(a > 0, a, jnp.float32(1.0))),
                          jnp.float32(0.0))
    params = jnp.stack([alpha_log, b])            # (2,) f32, SMEM prefetch

    flat = x.reshape(-1)                          # free (bitcast) reshape
    aligned = (total // LANE) * LANE
    tail = total - aligned

    pieces = []
    if aligned > 0:
        lane_width = _pick_lane_width(aligned)
        rows = aligned // lane_width
        tile_rows = _pick_tile_rows(rows, lane_width, itemsize)
        head = flat if tail == 0 else flat[:aligned]
        out2d = _nmda_2d(head.reshape(rows, lane_width), params,
                         tile_rows, lane_width, itemsize)
        pieces.append(out2d.reshape(-1))
    if tail > 0:
        # <128-element tail: trivial jnp expression, no whole-array pad/slice.
        t = flat[aligned:].astype(jnp.float32)
        sig = 0.5 * (jnp.tanh(0.5 * (b * t - alpha_log)) + 1.0)
        pieces.append((t * sig).astype(dtype))

    out_flat = pieces[0] if len(pieces) == 1 else jnp.concatenate(pieces)
    return out_flat.reshape(orig_shape)


def nmda_reference(x, alpha, beta):
    """Pure-JAX reference mirroring the PyTorch forward."""
    a = alpha.reshape(-1)[0]
    alpha_log = jnp.where(a > 0, jnp.log(jnp.where(a > 0, a, 1.0)), 0.0)
    return x * jax.nn.sigmoid(beta.reshape(-1)[0] * x - alpha_log)


if __name__ == "__main__":
    key = jax.random.PRNGKey(0)
    k0, k1, k2 = jax.random.split(key, 3)

    # Parameters matching nn.Parameter(torch.tensor([1.0])).
    alpha = jnp.array([1.0], dtype=jnp.float32)
    beta = jnp.array([1.0], dtype=jnp.float32)

    # Module-scale NCHW input: 2*4*16*16 = 2048 elems -> single (2, 1024) block.
    x = jax.random.normal(k0, (2, 4, 16, 16), dtype=jnp.float32)
    out = jax.block_until_ready(nmda_forward(x, alpha, beta))
    ref = nmda_reference(x, alpha, beta)
    assert out.shape == x.shape and out.dtype == x.dtype
    assert jnp.allclose(out, ref, atol=1e-5, rtol=1e-5), "f32 small mismatch"

    # Multi-step grid path: 4*8*128*128 = 524288 elems -> 2 x (256, 1024) blocks.
    x_big = jax.random.normal(k1, (4, 8, 128, 128), dtype=jnp.float32)
    out_big = jax.block_until_ready(nmda_forward(x_big, alpha, beta))
    ref_big = nmda_reference(x_big, alpha, beta)
    assert jnp.allclose(out_big, ref_big, atol=1e-5, rtol=1e-5), "f32 big mismatch"

    # Unaligned element count (3*5*7*11 = 1155): kernel on the 1152-elem
    # aligned prefix + 3-element jnp tail.
    x_odd = jax.random.normal(k2, (3, 5, 7, 11), dtype=jnp.float32)
    out_odd = jax.block_until_ready(nmda_forward(x_odd, alpha, beta))
    ref_odd = nmda_reference(x_odd, alpha, beta)
    assert out_odd.shape == x_odd.shape and out_odd.dtype == x_odd.dtype
    assert jnp.allclose(out_odd, ref_odd, atol=1e-5, rtol=1e-5), "f32 unaligned mismatch"

    # Native bf16 HBM path (f32 math on the tile inside the kernel).
    x_bf16 = x.astype(jnp.bfloat16)
    out_bf16 = jax.block_until_ready(nmda_forward(x_bf16, alpha, beta))
    ref_bf16 = nmda_reference(x_bf16.astype(jnp.float32), alpha, beta).astype(jnp.bfloat16)
    assert out_bf16.shape == x_bf16.shape and out_bf16.dtype == jnp.bfloat16
    assert jnp.allclose(out_bf16.astype(jnp.float32), ref_bf16.astype(jnp.float32),
                        atol=2e-2, rtol=2e-2), "bf16 mismatch"

    # alpha <= 0 branch of the PyTorch forward (log term replaced by 0).
    alpha_neg = jnp.array([-0.5], dtype=jnp.float32)
    out_neg = jax.block_until_ready(nmda_forward(x, alpha_neg, beta))
    ref_neg = nmda_reference(x, alpha_neg, beta)
    assert jnp.allclose(out_neg, ref_neg, atol=1e-5, rtol=1e-5), "alpha<=0 mismatch"

    print("KERNEL_OK")
</pallas_src>

<mosaic_0001>
module attributes {stable_mosaic.version = 11 : i64} {
  func.func @nmda_kernel(%arg0: i32, %arg1: memref<2xf32, #tpu.memory_space<smem>>, %arg2: memref<2x1024xf32, #tpu.memory_space<vmem>>, %arg3: memref<2x1024xf32, #tpu.memory_space<vmem>>) attributes {dimension_semantics = [#tpu.dimension_semantics<parallel>], iteration_bounds = array<i64: 1>, scalar_prefetch = 1 : i64, scratch_operands = 0 : i64, tpu.core_type = #tpu.core_type<tc>, window_params = [{transform_indices = @transform_0, window_bounds = array<i64: 2, 1024>}, {transform_indices = @transform_1, window_bounds = array<i64: 2, 1024>}]} {
    %c0 = arith.constant 0 : index
    %0 = memref.load %arg1[%c0] : memref<2xf32, #tpu.memory_space<smem>>
    %c1 = arith.constant 1 : index
    %1 = memref.load %arg1[%c1] : memref<2xf32, #tpu.memory_space<smem>>
    %c0_0 = arith.constant 0 : index
    %c0_1 = arith.constant 0 : index
    %2 = vector.load %arg2[%c0_0, %c0_1] : memref<2x1024xf32, #tpu.memory_space<vmem>>, vector<2x1024xf32>
    %3 = vector.broadcast %1 : f32 to vector<2x1024xf32>
    %4 = arith.mulf %3, %2 : vector<2x1024xf32>
    %5 = vector.broadcast %0 : f32 to vector<2x1024xf32>
    %6 = arith.subf %4, %5 : vector<2x1024xf32>
    %cst = arith.constant 5.000000e-01 : f32
    %7 = vector.broadcast %cst : f32 to vector<2x1024xf32>
    %8 = arith.mulf %7, %6 : vector<2x1024xf32>
    %9 = math.tanh %8 : vector<2x1024xf32>
    %cst_2 = arith.constant 1.000000e+00 : f32
    %10 = vector.broadcast %cst_2 : f32 to vector<2x1024xf32>
    %11 = arith.addf %9, %10 : vector<2x1024xf32>
    %cst_3 = arith.constant 5.000000e-01 : f32
    %12 = vector.broadcast %cst_3 : f32 to vector<2x1024xf32>
    %13 = arith.mulf %12, %11 : vector<2x1024xf32>
    %14 = arith.mulf %2, %13 : vector<2x1024xf32>
    %c0_4 = arith.constant 0 : index
    %c0_5 = arith.constant 0 : index
    %15 = vector.load %arg3[%c0_4, %c0_5] : memref<2x1024xf32, #tpu.memory_space<vmem>>, vector<2x1024xf32>
    tpu.vector_store %arg3[%c0_4, %c0_5], %14 {strides = array<i32>} : memref<2x1024xf32, #tpu.memory_space<vmem>>, vector<2x1024xf32>,
    return
  }
  func.func @transform_0(%arg0: i32, %arg1: memref<2xf32, #tpu.memory_space<smem>>) -> (i32, i32) {
    %c0_i32 = arith.constant 0 : i32
    %c0_i32_0 = arith.constant 0 : i32
    return %arg0, %c0_i32 : i32, i32
  }
  func.func @transform_1(%arg0: i32, %arg1: memref<2xf32, #tpu.memory_space<smem>>) -> (i32, i32) {
    %c0_i32 = arith.constant 0 : i32
    %c0_i32_0 = arith.constant 0 : i32
    return %arg0, %c0_i32 : i32, i32
  }
}

</mosaic_0001>

<llo_original>
// kernel: tpu_custom_call.1
$region0: #{tpu_custom_call.1}
  #allocation0 [shape = 'u32[]', space=smem, size = 0x4, offset = 0x4, fixed_abs, tag = 'smem constant byte address 0x4 - core index']
  #allocation1 [shape = 'u32[144,128]{1,0:T(1,128)}', space=vmem, size = 0x12000, scoped, tag = 'internal scratch']
  #allocation2 [shape = 's32[1]{0}', space=sflag, size = 0x4, scoped, tag = 'scoped memory for tpu_custom_call.1']
  #allocation3 [shape = 'u8[512]{0}', space=smem, size = 0x200, scoped, tag = 'prefetched SMEM operand 0']
  %s0 = inlined_call_operand.hbm [shape: f32[2], index: 0, kind: input, shape index: {}]
  %s1 = inlined_call_operand.hbm [shape: f32[2,1024], index: 1, kind: input, shape index: {}]
  %s2 = inlined_call_operand.hbm [shape: f32[2,1024], index: 2, kind: output, shape index: {}]
  %s3 = sld [smem:[#allocation0]]
  $region18: #{tpu_custom_call.1} parent=0
    _
  %s5 = ssub.s32 1, %s3
  %s6 = scalar_select 0, %s5, %s3
  %8 = dma.hbm_to_smem %s0, 16, [#allocation3], [#allocation2]
  %9 = dma.done [#allocation2], 16
  %10 = sfence
  $region1: #{tpu_custom_call.1} parent=0
    #allocation4 [shape = 'u8[8192]{0}', space=vmem, size = 0x2000, scoped, tag = 'input window, operand 1, single buffered']
    #allocation5 [shape = 's32[1]{0}', space=sflag, size = 0x4, scoped, tag = 'scoped memory for tpu_custom_call.1']
    #allocation6 [shape = 's32[1]{0}', space=sflag, size = 0x4, scoped, tag = 'scoped memory for tpu_custom_call.1']
    #allocation7 [shape = 'u8[8192]{0}', space=vmem, size = 0x2000, scoped, tag = 'output window, operand 0, single buffered']
    %11 = vsyncpa [#allocation5], 0
    %12 = vsyncpa [#allocation6], 0
    // Predicated region
    $region2: #{tpu_custom_call.1} parent=1 // pred_check
      _
    $region3: #{tpu_custom_call.1} parent=1 // pred_check_branch
      %14 = sbr.rel (0) target = $region5
    $region4: #{tpu_custom_call.1} parent=1 // pred_region
      %s16 = ssub.s32 256, 256
      %17 = vsyncadd [#allocation5], %s16
      %s19 = sshll.u32 [#allocation4], 4
      %s20 = int_to_ptr.vmem [resolvable:$true] %s19
      %22 = dma.hbm_to_vmem [thread:$0]  %s1, 256, %s20, [#allocation5]
    $region5: #{tpu_custom_call.1} parent=1 // pred_fallthru
      _
    // Predicated region
    $region6: #{tpu_custom_call.1} parent=1 // pred_check
      _
    $region7: #{tpu_custom_call.1} parent=1 // pred_check_branch
      %24 = sbr.rel (0) target = $region9
    $region8: #{tpu_custom_call.1} parent=1 // pred_region
      %25 = dma.done [#allocation5], 256
    $region9: #{tpu_custom_call.1} parent=1 // pred_fallthru
      _
    %s26 = sld [smem:[#allocation3]]
    %s27 = sld [smem:[#allocation3 + $0x1]]
    %v28 = vld [vmem:[#allocation4] sm:$0xff]
    %v29 = vld [vmem:[#allocation4 + $0x8] sm:$0xff]
    %v30 = vstv %s27
    %v31 = vmul.f32 %v30, %v28
    %v32 = vmul.f32 %v30, %v29
    %v33 = vstv %s26
    %v34 = vsub.f32 %v31, %v33
    %v35 = vsub.f32 %v32, %v33
    %v36 = vmul.f32 %v34, 0.5
    %v37 = vmul.f32 %v35, 0.5
    %v38 = vtanh.pop %v36
    %v39 = vtanh.pop %v37
    %v40 = vadd.f32 %v38, 1.0
    %v41 = vadd.f32 %v39, 1.0
    %v42 = vmul.f32 %v40, 0.5
    %v43 = vmul.f32 %v41, 0.5
    %v44 = vmul.f32 %v28, %v42
    %v45 = vmul.f32 %v29, %v43
    %46 = vst [vmem:[#allocation7] sm:$0xff] %v44
    %47 = vst [vmem:[#allocation7 + $0x8] sm:$0xff] %v45
    // Predicated region
    $region10: #{tpu_custom_call.1} parent=1 // pred_check
      _
    $region11: #{tpu_custom_call.1} parent=1 // pred_check_branch
      %49 = sbr.rel (0) target = $region13
    $region12: #{tpu_custom_call.1} parent=1 // pred_region
      %s51 = ssub.s32 256, 256
      %52 = vsyncadd [#allocation6], %s51
      %s54 = sshll.u32 [#allocation7], 4
      %s55 = int_to_ptr.vmem [resolvable:$true] %s54
      %57 = dma.vmem_to_hbm [thread:$0]  %s55, 256, %s2, [#allocation6]
    $region13: #{tpu_custom_call.1} parent=1 // pred_fallthru
      _
    // Predicated region
    $region14: #{tpu_custom_call.1} parent=1 // pred_check
      _
    $region15: #{tpu_custom_call.1} parent=1 // pred_check_branch
      %59 = sbr.rel (0) target = $region17
    $region16: #{tpu_custom_call.1} parent=1 // pred_region
      %60 = dma.done [#allocation6], 256
    $region17: #{tpu_custom_call.1} parent=1 // pred_fallthru
      _
    %61 = vsyncpa [#allocation5], 1
    %62 = vsyncpa [#allocation6], 1

</llo_original>
